<compile_context>
chip_gen: v5e
topology: v5e:2x2
jax: 0.10.0
libtpu: 0.0.40
codegen_flags: <defaults>
</compile_context>

<pallas_src>
import functools

import jax
import jax.numpy as jnp
from jax import lax
from jax.experimental import pallas as pl
from jax.experimental.pallas import tpu as pltpu

EPS = 1e-5  # PyTorch InstanceNorm2d default


# ---------------------------------------------------------------------------
# Kernel helpers (traced inside the Pallas kernel body)
# ---------------------------------------------------------------------------
def _shift_lanes(v, d):
    """Circular shift along the last (lane) axis: out[..., p] = v[..., (p+d) % n].

    Slice + concatenate lowers to lane rotations (XLU); equivalent to
    jnp.roll(v, -d, axis=-1).  Wrap-around values are only ever used at
    positions that the reflect fix-ups overwrite.
    """
    n = v.shape[-1]
    d = d % n
    if d == 0:
        return v
    return jnp.concatenate([v[..., d:], v[..., :d]], axis=-1)


def _im2col_reflect3x3(a, m_left, m_right, m_top, m_bot, W):
    """Build the (9*C, H*W) im2col matrix of a (C, H*W) tile for a 3x3 conv
    with ReflectionPad2d(1).  Tap order is (kh, kw) row-major with channels
    minor, matching the flattened weight layout produced by the wrapper."""
    a_l = _shift_lanes(a, -1)                    # a[h, w-1]
    a_r = _shift_lanes(a, +1)                    # a[h, w+1]
    w_taps = [
        jnp.where(m_left, a_r, a_l),             # dw = -1 (reflect at w = 0)
        a,                                       # dw =  0
        jnp.where(m_right, a_l, a_r),            # dw = +1 (reflect at w = W-1)
    ]
    taps = [[None] * 3 for _ in range(3)]
    for kw, wt in enumerate(w_taps):
        up = _shift_lanes(wt, -W)                # wt[h-1, w]
        dn = _shift_lanes(wt, +W)                # wt[h+1, w]
        taps[0][kw] = jnp.where(m_top, dn, up)   # dh = -1 (reflect at h = 0)
        taps[1][kw] = wt                         # dh =  0
        taps[2][kw] = jnp.where(m_bot, up, dn)   # dh = +1 (reflect at h = H-1)
    return jnp.concatenate(
        [taps[kh][kw] for kh in range(3) for kw in range(3)], axis=0)


def _instance_norm(y, inv_hw):
    """InstanceNorm2d(affine=False) over the lane (spatial) axis of (C, H*W)
    with fused one-pass statistics (var = E[y^2] - mean^2)."""
    s = jnp.sum(y, axis=1, keepdims=True)
    ss = jnp.sum(y * y, axis=1, keepdims=True)
    mean = s * inv_hw
    var = jnp.maximum(ss * inv_hw - mean * mean, 0.0)
    return (y - mean) * lax.rsqrt(var + EPS)


# ---------------------------------------------------------------------------
# Pallas kernel: one grid step processes `samples_per_block` samples.
# ---------------------------------------------------------------------------
def _resnet_block_kernel(x_ref, w1_ref, b1_ref, w2_ref, b2_ref, o_ref, *, H, W):
    C = x_ref.shape[1]
    HW = H * W
    inv_hw = 1.0 / float(HW)

    w1 = w1_ref[...]                   # (C, 9*C), (kh, kw, ci)-flattened
    w2 = w2_ref[...]
    b1 = b1_ref[...]                   # (C, 1)
    b2 = b2_ref[...]

    # Border masks over the flattened spatial axis (no vector int division).
    lane = lax.broadcasted_iota(jnp.int32, (C, HW), 1)
    if W & (W - 1) == 0:               # power-of-two fast path (W = 16 here)
        lane_mod_w = lane & (W - 1)
    else:
        lane_mod_w = lane % W
    m_left = lane_mod_w == 0
    m_right = lane_mod_w == W - 1
    m_top = lane < W
    m_bot = lane >= HW - W

    for s in range(x_ref.shape[0]):    # static; > 1 only when batch is folded
        x = x_ref[s]                   # (C, H*W) float32
        # conv1 (+bias) -> InstanceNorm -> ReLU
        y = jnp.dot(w1, _im2col_reflect3x3(x, m_left, m_right, m_top, m_bot, W),
                    preferred_element_type=jnp.float32) + b1
        y = jnp.maximum(_instance_norm(y, inv_hw), 0.0)
        # conv2 (+bias) -> InstanceNorm   (bias kept for module fidelity even
        # though the following mean subtraction cancels it exactly)
        z = jnp.dot(w2, _im2col_reflect3x3(y, m_left, m_right, m_top, m_bot, W),
                    preferred_element_type=jnp.float32) + b2
        z = _instance_norm(z, inv_hw)
        # skip connection
        o_ref[s] = (x + z).astype(o_ref.dtype)


# ---------------------------------------------------------------------------
# Wrapper: layout conversion + pallas_call
# ---------------------------------------------------------------------------
def resnet_block(x_nchw, w1_oihw, b1, w2_oihw, b2, *, samples_per_block=1):
    N, C, H, W = x_nchw.shape
    assert H >= 2 and W >= 2, "ReflectionPad2d(1) requires H, W >= 2"
    assert N % samples_per_block == 0
    HW = H * W
    S = samples_per_block

    # Lane-dense relayout: (N, C, H*W) keeps the spatial axis on lanes.
    x = x_nchw.reshape(N, C, HW).astype(jnp.float32)

    # OIHW -> (C_out, 9*C_in) with (kh, kw, ci) ordering matching the kernel's
    # im2col tap order; biases to (C, 1) (channels on sublanes).
    def flatten_w(w):
        return jnp.transpose(w, (0, 2, 3, 1)).reshape(C, 9 * C).astype(jnp.float32)

    w1f, w2f = flatten_w(w1_oihw), flatten_w(w2_oihw)
    b1c = b1.reshape(C, 1).astype(jnp.float32)
    b2c = b2.reshape(C, 1).astype(jnp.float32)

    kernel = functools.partial(_resnet_block_kernel, H=H, W=W)

    out = pl.pallas_call(
        kernel,
        out_shape=jax.ShapeDtypeStruct((N, C, HW), jnp.float32),
        grid_spec=pltpu.PrefetchScalarGridSpec(
            num_scalar_prefetch=0,
            grid=(N // S,),
            in_specs=[
                pl.BlockSpec((S, C, HW), lambda n: (n, 0, 0)),
                pl.BlockSpec((C, 9 * C), lambda n: (0, 0)),
                pl.BlockSpec((C, 1), lambda n: (0, 0)),
                pl.BlockSpec((C, 9 * C), lambda n: (0, 0)),
                pl.BlockSpec((C, 1), lambda n: (0, 0)),
            ],
            out_specs=pl.BlockSpec((S, C, HW), lambda n: (n, 0, 0)),
        ),
        compiler_params=pltpu.CompilerParams(
            dimension_semantics=("parallel",)),
    )(x, w1f, b1c, w2f, b2c)

    return out.reshape(N, C, H, W)


# ---------------------------------------------------------------------------
# Pure-JAX reference for correctness checking
# ---------------------------------------------------------------------------
def resnet_block_ref(x_nchw, w1_oihw, b1, w2_oihw, b2):
    x = jnp.transpose(x_nchw, (0, 2, 3, 1)).astype(jnp.float32)

    def conv(a, w_oihw, b):
        a_pad = jnp.pad(a, ((0, 0), (1, 1), (1, 1), (0, 0)), mode="reflect")
        y = lax.conv_general_dilated(
            a_pad, jnp.transpose(w_oihw, (2, 3, 1, 0)).astype(jnp.float32),
            window_strides=(1, 1), padding="VALID",
            dimension_numbers=("NHWC", "HWIO", "NHWC"))
        return y + b.reshape(1, 1, 1, -1)

    def inorm(y):
        m = jnp.mean(y, axis=(1, 2), keepdims=True)
        v = jnp.mean((y - m) ** 2, axis=(1, 2), keepdims=True)
        return (y - m) / jnp.sqrt(v + EPS)

    y = jnp.maximum(inorm(conv(x, w1_oihw, b1)), 0.0)
    z = inorm(conv(y, w2_oihw, b2))
    return jnp.transpose(x + z, (0, 3, 1, 2))


if __name__ == "__main__":
    N, C, H, W = 2, 4, 16, 16
    key = jax.random.PRNGKey(0)
    kx, kw1, kb1, kw2, kb2 = jax.random.split(key, 5)

    x = jax.random.normal(kx, (N, C, H, W), dtype=jnp.float32)
    # deterministic synthetic parameters (PyTorch Conv2d shapes: OIHW, (O,))
    w1 = jax.random.normal(kw1, (C, C, 3, 3), dtype=jnp.float32) * 0.1
    b1 = jax.random.normal(kb1, (C,), dtype=jnp.float32) * 0.1
    w2 = jax.random.normal(kw2, (C, C, 3, 3), dtype=jnp.float32) * 0.1
    b2 = jax.random.normal(kb2, (C,), dtype=jnp.float32) * 0.1

    out = jax.block_until_ready(resnet_block(x, w1, b1, w2, b2))
    ref = jax.block_until_ready(resnet_block_ref(x, w1, b1, w2, b2))

    assert out.shape == (N, C, H, W)
    assert jnp.allclose(out, ref, atol=1e-4, rtol=1e-4), (
        float(jnp.max(jnp.abs(out - ref))))
    print("KERNEL_OK")
</pallas_src>

<mosaic_0001>
module attributes {stable_mosaic.version = 11 : i64} {
  func.func @_resnet_block_kernel(%arg0: i32, %arg1: memref<1x4x256xf32, #tpu.memory_space<vmem>>, %arg2: memref<4x36xf32, #tpu.memory_space<vmem>>, %arg3: memref<4x1xf32, #tpu.memory_space<vmem>>, %arg4: memref<4x36xf32, #tpu.memory_space<vmem>>, %arg5: memref<4x1xf32, #tpu.memory_space<vmem>>, %arg6: memref<1x4x256xf32, #tpu.memory_space<vmem>>) attributes {dimension_semantics = [#tpu.dimension_semantics<parallel>], iteration_bounds = array<i64: 2>, scalar_prefetch = 0 : i64, scratch_operands = 0 : i64, tpu.core_type = #tpu.core_type<tc>, window_params = [{transform_indices = @transform_0, window_bounds = array<i64: 1, 4, 256>}, {pipeline_mode = #tpu.pipeline_mode<synchronous>, transform_indices = @transform_1, window_bounds = array<i64: 4, 36>}, {pipeline_mode = #tpu.pipeline_mode<synchronous>, transform_indices = @transform_2, window_bounds = array<i64: 4, 1>}, {pipeline_mode = #tpu.pipeline_mode<synchronous>, transform_indices = @transform_3, window_bounds = array<i64: 4, 36>}, {pipeline_mode = #tpu.pipeline_mode<synchronous>, transform_indices = @transform_4, window_bounds = array<i64: 4, 1>}, {transform_indices = @transform_5, window_bounds = array<i64: 1, 4, 256>}]} {
    %c0 = arith.constant 0 : index
    %c0_0 = arith.constant 0 : index
    %0 = vector.load %arg2[%c0, %c0_0] : memref<4x36xf32, #tpu.memory_space<vmem>>, vector<4x36xf32>
    %c0_1 = arith.constant 0 : index
    %c0_2 = arith.constant 0 : index
    %1 = vector.load %arg4[%c0_1, %c0_2] : memref<4x36xf32, #tpu.memory_space<vmem>>, vector<4x36xf32>
    %c0_3 = arith.constant 0 : index
    %c0_4 = arith.constant 0 : index
    %2 = vector.load %arg3[%c0_3, %c0_4] : memref<4x1xf32, #tpu.memory_space<vmem>>, vector<4x1xf32>
    %c0_5 = arith.constant 0 : index
    %c0_6 = arith.constant 0 : index
    %3 = vector.load %arg5[%c0_5, %c0_6] : memref<4x1xf32, #tpu.memory_space<vmem>>, vector<4x1xf32>
    %4 = tpu.iota {dimensions = array<i32: 1>} : vector<4x256xi32>
    %c15_i32 = arith.constant 15 : i32
    %5 = vector.broadcast %c15_i32 : i32 to vector<4x256xi32>
    %6 = arith.andi %4, %5 : vector<4x256xi32>
    %c0_i32 = arith.constant 0 : i32
    %7 = vector.broadcast %c0_i32 : i32 to vector<4x256xi32>
    %8 = arith.cmpi eq, %6, %7 : vector<4x256xi32>
    %c15_i32_7 = arith.constant 15 : i32
    %9 = vector.broadcast %c15_i32_7 : i32 to vector<4x256xi32>
    %10 = arith.cmpi eq, %6, %9 : vector<4x256xi32>
    %c16_i32 = arith.constant 16 : i32
    %11 = vector.broadcast %c16_i32 : i32 to vector<4x256xi32>
    %12 = arith.cmpi slt, %4, %11 : vector<4x256xi32>
    %c240_i32 = arith.constant 240 : i32
    %13 = vector.broadcast %c240_i32 : i32 to vector<4x256xi32>
    %14 = arith.cmpi sge, %4, %13 : vector<4x256xi32>
    %c0_8 = arith.constant 0 : index
    %c0_9 = arith.constant 0 : index
    %c0_10 = arith.constant 0 : index
    %15 = vector.load %arg1[%c0_8, %c0_9, %c0_10] : memref<1x4x256xf32, #tpu.memory_space<vmem>>, vector<1x4x256xf32>
    %16 = vector.shape_cast %15 : vector<1x4x256xf32> to vector<4x256xf32>
    %17 = vector.extract_strided_slice %16 {offsets = [0, 255], sizes = [4, 1], strides = [1, 1]} : vector<4x256xf32> to vector<4x1xf32>
    %18 = vector.extract_strided_slice %16 {offsets = [0, 0], sizes = [4, 255], strides = [1, 1]} : vector<4x256xf32> to vector<4x255xf32>
    %19 = tpu.concatenate %17, %18 in 1 : vector<4x1xf32>, vector<4x255xf32> -> vector<4x256xf32>
    %20 = vector.extract_strided_slice %16 {offsets = [0, 1], sizes = [4, 255], strides = [1, 1]} : vector<4x256xf32> to vector<4x255xf32>
    %21 = vector.extract_strided_slice %16 {offsets = [0, 0], sizes = [4, 1], strides = [1, 1]} : vector<4x256xf32> to vector<4x1xf32>
    %22 = tpu.concatenate %20, %21 in 1 : vector<4x255xf32>, vector<4x1xf32> -> vector<4x256xf32>
    %23 = arith.select %8, %22, %19 : vector<4x256xi1>, vector<4x256xf32>
    %24 = arith.select %10, %19, %22 : vector<4x256xi1>, vector<4x256xf32>
    %25 = vector.extract_strided_slice %23 {offsets = [0, 240], sizes = [4, 16], strides = [1, 1]} : vector<4x256xf32> to vector<4x16xf32>
    %26 = vector.extract_strided_slice %23 {offsets = [0, 0], sizes = [4, 240], strides = [1, 1]} : vector<4x256xf32> to vector<4x240xf32>
    %27 = tpu.concatenate %25, %26 in 1 : vector<4x16xf32>, vector<4x240xf32> -> vector<4x256xf32>
    %28 = vector.extract_strided_slice %23 {offsets = [0, 16], sizes = [4, 240], strides = [1, 1]} : vector<4x256xf32> to vector<4x240xf32>
    %29 = vector.extract_strided_slice %23 {offsets = [0, 0], sizes = [4, 16], strides = [1, 1]} : vector<4x256xf32> to vector<4x16xf32>
    %30 = tpu.concatenate %28, %29 in 1 : vector<4x240xf32>, vector<4x16xf32> -> vector<4x256xf32>
    %31 = arith.select %12, %30, %27 : vector<4x256xi1>, vector<4x256xf32>
    %32 = arith.select %14, %27, %30 : vector<4x256xi1>, vector<4x256xf32>
    %33 = vector.extract_strided_slice %16 {offsets = [0, 240], sizes = [4, 16], strides = [1, 1]} : vector<4x256xf32> to vector<4x16xf32>
    %34 = vector.extract_strided_slice %16 {offsets = [0, 0], sizes = [4, 240], strides = [1, 1]} : vector<4x256xf32> to vector<4x240xf32>
    %35 = tpu.concatenate %33, %34 in 1 : vector<4x16xf32>, vector<4x240xf32> -> vector<4x256xf32>
    %36 = vector.extract_strided_slice %16 {offsets = [0, 16], sizes = [4, 240], strides = [1, 1]} : vector<4x256xf32> to vector<4x240xf32>
    %37 = vector.extract_strided_slice %16 {offsets = [0, 0], sizes = [4, 16], strides = [1, 1]} : vector<4x256xf32> to vector<4x16xf32>
    %38 = tpu.concatenate %36, %37 in 1 : vector<4x240xf32>, vector<4x16xf32> -> vector<4x256xf32>
    %39 = arith.select %12, %38, %35 : vector<4x256xi1>, vector<4x256xf32>
    %40 = arith.select %14, %35, %38 : vector<4x256xi1>, vector<4x256xf32>
    %41 = vector.extract_strided_slice %24 {offsets = [0, 240], sizes = [4, 16], strides = [1, 1]} : vector<4x256xf32> to vector<4x16xf32>
    %42 = vector.extract_strided_slice %24 {offsets = [0, 0], sizes = [4, 240], strides = [1, 1]} : vector<4x256xf32> to vector<4x240xf32>
    %43 = tpu.concatenate %41, %42 in 1 : vector<4x16xf32>, vector<4x240xf32> -> vector<4x256xf32>
    %44 = vector.extract_strided_slice %24 {offsets = [0, 16], sizes = [4, 240], strides = [1, 1]} : vector<4x256xf32> to vector<4x240xf32>
    %45 = vector.extract_strided_slice %24 {offsets = [0, 0], sizes = [4, 16], strides = [1, 1]} : vector<4x256xf32> to vector<4x16xf32>
    %46 = tpu.concatenate %44, %45 in 1 : vector<4x240xf32>, vector<4x16xf32> -> vector<4x256xf32>
    %47 = arith.select %12, %46, %43 : vector<4x256xi1>, vector<4x256xf32>
    %48 = arith.select %14, %43, %46 : vector<4x256xi1>, vector<4x256xf32>
    %49 = tpu.concatenate %31, %39, %47, %23, %16, %24, %32, %40, %48 in 0 : vector<4x256xf32>, vector<4x256xf32>, vector<4x256xf32>, vector<4x256xf32>, vector<4x256xf32>, vector<4x256xf32>, vector<4x256xf32>, vector<4x256xf32>, vector<4x256xf32> -> vector<36x256xf32>
    %cst = arith.constant dense<0.000000e+00> : vector<4x256xf32>
    %50 = tpu.matmul %0, %49, %cst {dimension_numbers = #tpu.dot_dimension_numbers<[1], [0], [0], [1], [0, 0, 1, 1], [], []>} : vector<4x36xf32>, vector<36x256xf32>, vector<4x256xf32> -> vector<4x256xf32>
    %51 = vector.broadcast %2 : vector<4x1xf32> to vector<4x256xf32>
    %52 = arith.addf %50, %51 : vector<4x256xf32>
    %cst_11 = arith.constant dense<0.000000e+00> : vector<4xf32>
    %53 = vector.multi_reduction <add>, %52, %cst_11 [1] : vector<4x256xf32> to vector<4xf32>
    %54 = vector.shape_cast %53 : vector<4xf32> to vector<4x1xf32>
    %55 = arith.mulf %52, %52 : vector<4x256xf32>
    %cst_12 = arith.constant dense<0.000000e+00> : vector<4xf32>
    %56 = vector.multi_reduction <add>, %55, %cst_12 [1] : vector<4x256xf32> to vector<4xf32>
    %57 = vector.shape_cast %56 : vector<4xf32> to vector<4x1xf32>
    %cst_13 = arith.constant 3.906250e-03 : f32
    %58 = vector.broadcast %cst_13 : f32 to vector<4x1xf32>
    %59 = arith.mulf %54, %58 : vector<4x1xf32>
    %cst_14 = arith.constant 3.906250e-03 : f32
    %60 = vector.broadcast %cst_14 : f32 to vector<4x1xf32>
    %61 = arith.mulf %57, %60 : vector<4x1xf32>
    %62 = arith.mulf %59, %59 : vector<4x1xf32>
    %63 = arith.subf %61, %62 : vector<4x1xf32>
    %cst_15 = arith.constant 0.000000e+00 : f32
    %64 = vector.broadcast %cst_15 : f32 to vector<4x1xf32>
    %65 = arith.maximumf %63, %64 : vector<4x1xf32>
    %66 = vector.broadcast %59 : vector<4x1xf32> to vector<4x256xf32>
    %67 = arith.subf %52, %66 : vector<4x256xf32>
    %cst_16 = arith.constant 9.99999974E-6 : f32
    %68 = vector.broadcast %cst_16 : f32 to vector<4x1xf32>
    %69 = arith.addf %65, %68 : vector<4x1xf32>
    %70 = math.rsqrt %69 : vector<4x1xf32>
    %71 = vector.broadcast %70 : vector<4x1xf32> to vector<4x256xf32>
    %72 = arith.mulf %67, %71 : vector<4x256xf32>
    %cst_17 = arith.constant 0.000000e+00 : f32
    %73 = vector.broadcast %cst_17 : f32 to vector<4x256xf32>
    %74 = arith.maximumf %72, %73 : vector<4x256xf32>
    %75 = vector.extract_strided_slice %74 {offsets = [0, 255], sizes = [4, 1], strides = [1, 1]} : vector<4x256xf32> to vector<4x1xf32>
    %76 = vector.extract_strided_slice %74 {offsets = [0, 0], sizes = [4, 255], strides = [1, 1]} : vector<4x256xf32> to vector<4x255xf32>
    %77 = tpu.concatenate %75, %76 in 1 : vector<4x1xf32>, vector<4x255xf32> -> vector<4x256xf32>
    %78 = vector.extract_strided_slice %74 {offsets = [0, 1], sizes = [4, 255], strides = [1, 1]} : vector<4x256xf32> to vector<4x255xf32>
    %79 = vector.extract_strided_slice %74 {offsets = [0, 0], sizes = [4, 1], strides = [1, 1]} : vector<4x256xf32> to vector<4x1xf32>
    %80 = tpu.concatenate %78, %79 in 1 : vector<4x255xf32>, vector<4x1xf32> -> vector<4x256xf32>
    %81 = arith.select %8, %80, %77 : vector<4x256xi1>, vector<4x256xf32>
    %82 = arith.select %10, %77, %80 : vector<4x256xi1>, vector<4x256xf32>
    %83 = vector.extract_strided_slice %81 {offsets = [0, 240], sizes = [4, 16], strides = [1, 1]} : vector<4x256xf32> to vector<4x16xf32>
    %84 = vector.extract_strided_slice %81 {offsets = [0, 0], sizes = [4, 240], strides = [1, 1]} : vector<4x256xf32> to vector<4x240xf32>
    %85 = tpu.concatenate %83, %84 in 1 : vector<4x16xf32>, vector<4x240xf32> -> vector<4x256xf32>
    %86 = vector.extract_strided_slice %81 {offsets = [0, 16], sizes = [4, 240], strides = [1, 1]} : vector<4x256xf32> to vector<4x240xf32>
    %87 = vector.extract_strided_slice %81 {offsets = [0, 0], sizes = [4, 16], strides = [1, 1]} : vector<4x256xf32> to vector<4x16xf32>
    %88 = tpu.concatenate %86, %87 in 1 : vector<4x240xf32>, vector<4x16xf32> -> vector<4x256xf32>
    %89 = arith.select %12, %88, %85 : vector<4x256xi1>, vector<4x256xf32>
    %90 = arith.select %14, %85, %88 : vector<4x256xi1>, vector<4x256xf32>
    %91 = vector.extract_strided_slice %74 {offsets = [0, 240], sizes = [4, 16], strides = [1, 1]} : vector<4x256xf32> to vector<4x16xf32>
    %92 = vector.extract_strided_slice %74 {offsets = [0, 0], sizes = [4, 240], strides = [1, 1]} : vector<4x256xf32> to vector<4x240xf32>
    %93 = tpu.concatenate %91, %92 in 1 : vector<4x16xf32>, vector<4x240xf32> -> vector<4x256xf32>
    %94 = vector.extract_strided_slice %74 {offsets = [0, 16], sizes = [4, 240], strides = [1, 1]} : vector<4x256xf32> to vector<4x240xf32>
    %95 = vector.extract_strided_slice %74 {offsets = [0, 0], sizes = [4, 16], strides = [1, 1]} : vector<4x256xf32> to vector<4x16xf32>
    %96 = tpu.concatenate %94, %95 in 1 : vector<4x240xf32>, vector<4x16xf32> -> vector<4x256xf32>
    %97 = arith.select %12, %96, %93 : vector<4x256xi1>, vector<4x256xf32>
    %98 = arith.select %14, %93, %96 : vector<4x256xi1>, vector<4x256xf32>
    %99 = vector.extract_strided_slice %82 {offsets = [0, 240], sizes = [4, 16], strides = [1, 1]} : vector<4x256xf32> to vector<4x16xf32>
    %100 = vector.extract_strided_slice %82 {offsets = [0, 0], sizes = [4, 240], strides = [1, 1]} : vector<4x256xf32> to vector<4x240xf32>
    %101 = tpu.concatenate %99, %100 in 1 : vector<4x16xf32>, vector<4x240xf32> -> vector<4x256xf32>
    %102 = vector.extract_strided_slice %82 {offsets = [0, 16], sizes = [4, 240], strides = [1, 1]} : vector<4x256xf32> to vector<4x240xf32>
    %103 = vector.extract_strided_slice %82 {offsets = [0, 0], sizes = [4, 16], strides = [1, 1]} : vector<4x256xf32> to vector<4x16xf32>
    %104 = tpu.concatenate %102, %103 in 1 : vector<4x240xf32>, vector<4x16xf32> -> vector<4x256xf32>
    %105 = arith.select %12, %104, %101 : vector<4x256xi1>, vector<4x256xf32>
    %106 = arith.select %14, %101, %104 : vector<4x256xi1>, vector<4x256xf32>
    %107 = tpu.concatenate %89, %97, %105, %81, %74, %82, %90, %98, %106 in 0 : vector<4x256xf32>, vector<4x256xf32>, vector<4x256xf32>, vector<4x256xf32>, vector<4x256xf32>, vector<4x256xf32>, vector<4x256xf32>, vector<4x256xf32>, vector<4x256xf32> -> vector<36x256xf32>
    %cst_18 = arith.constant dense<0.000000e+00> : vector<4x256xf32>
    %108 = tpu.matmul %1, %107, %cst_18 {dimension_numbers = #tpu.dot_dimension_numbers<[1], [0], [0], [1], [0, 0, 1, 1], [], []>} : vector<4x36xf32>, vector<36x256xf32>, vector<4x256xf32> -> vector<4x256xf32>
    %109 = vector.broadcast %3 : vector<4x1xf32> to vector<4x256xf32>
    %110 = arith.addf %108, %109 : vector<4x256xf32>
    %cst_19 = arith.constant dense<0.000000e+00> : vector<4xf32>
    %111 = vector.multi_reduction <add>, %110, %cst_19 [1] : vector<4x256xf32> to vector<4xf32>
    %112 = vector.shape_cast %111 : vector<4xf32> to vector<4x1xf32>
    %113 = arith.mulf %110, %110 : vector<4x256xf32>
    %cst_20 = arith.constant dense<0.000000e+00> : vector<4xf32>
    %114 = vector.multi_reduction <add>, %113, %cst_20 [1] : vector<4x256xf32> to vector<4xf32>
    %115 = vector.shape_cast %114 : vector<4xf32> to vector<4x1xf32>
    %cst_21 = arith.constant 3.906250e-03 : f32
    %116 = vector.broadcast %cst_21 : f32 to vector<4x1xf32>
    %117 = arith.mulf %112, %116 : vector<4x1xf32>
    %cst_22 = arith.constant 3.906250e-03 : f32
    %118 = vector.broadcast %cst_22 : f32 to vector<4x1xf32>
    %119 = arith.mulf %115, %118 : vector<4x1xf32>
    %120 = arith.mulf %117, %117 : vector<4x1xf32>
    %121 = arith.subf %119, %120 : vector<4x1xf32>
    %cst_23 = arith.constant 0.000000e+00 : f32
    %122 = vector.broadcast %cst_23 : f32 to vector<4x1xf32>
    %123 = arith.maximumf %121, %122 : vector<4x1xf32>
    %124 = vector.broadcast %117 : vector<4x1xf32> to vector<4x256xf32>
    %125 = arith.subf %110, %124 : vector<4x256xf32>
    %cst_24 = arith.constant 9.99999974E-6 : f32
    %126 = vector.broadcast %cst_24 : f32 to vector<4x1xf32>
    %127 = arith.addf %123, %126 : vector<4x1xf32>
    %128 = math.rsqrt %127 : vector<4x1xf32>
    %129 = vector.broadcast %128 : vector<4x1xf32> to vector<4x256xf32>
    %130 = arith.mulf %125, %129 : vector<4x256xf32>
    %131 = arith.addf %16, %130 : vector<4x256xf32>
    %c0_25 = arith.constant 0 : index
    %c0_26 = arith.constant 0 : index
    %c0_27 = arith.constant 0 : index
    %132 = vector.load %arg6[%c0_25, %c0_26, %c0_27] : memref<1x4x256xf32, #tpu.memory_space<vmem>>, vector<1x4x256xf32>
    %133 = vector.shape_cast %132 : vector<1x4x256xf32> to vector<4x256xf32>
    %134 = vector.shape_cast %131 : vector<4x256xf32> to vector<1x4x256xf32>
    tpu.vector_store %arg6[%c0_25, %c0_26, %c0_27], %134 {strides = array<i32>} : memref<1x4x256xf32, #tpu.memory_space<vmem>>, vector<1x4x256xf32>,
    return
  }
  func.func @transform_0(%arg0: i32) -> (i32, i32, i32) {
    %c0_i32 = arith.constant 0 : i32
    %c0_i32_0 = arith.constant 0 : i32
    %c0_i32_1 = arith.constant 0 : i32
    return %arg0, %c0_i32, %c0_i32_0 : i32, i32, i32
  }
  func.func @transform_1(%arg0: i32) -> (i32, i32) {
    %c0_i32 = arith.constant 0 : i32
    %c0_i32_0 = arith.constant 0 : i32
    %c0_i32_1 = arith.constant 0 : i32
    return %c0_i32, %c0_i32_0 : i32, i32
  }
  func.func @transform_2(%arg0: i32) -> (i32, i32) {
    %c0_i32 = arith.constant 0 : i32
    %c0_i32_0 = arith.constant 0 : i32
    %c0_i32_1 = arith.constant 0 : i32
    return %c0_i32, %c0_i32_0 : i32, i32
  }
  func.func @transform_3(%arg0: i32) -> (i32, i32) {
    %c0_i32 = arith.constant 0 : i32
    %c0_i32_0 = arith.constant 0 : i32
    %c0_i32_1 = arith.constant 0 : i32
    return %c0_i32, %c0_i32_0 : i32, i32
  }
  func.func @transform_4(%arg0: i32) -> (i32, i32) {
    %c0_i32 = arith.constant 0 : i32
    %c0_i32_0 = arith.constant 0 : i32
    %c0_i32_1 = arith.constant 0 : i32
    return %c0_i32, %c0_i32_0 : i32, i32
  }
  func.func @transform_5(%arg0: i32) -> (i32, i32, i32) {
    %c0_i32 = arith.constant 0 : i32
    %c0_i32_0 = arith.constant 0 : i32
    %c0_i32_1 = arith.constant 0 : i32
    return %arg0, %c0_i32, %c0_i32_0 : i32, i32, i32
  }
}

</mosaic_0001>

<llo_original>
// kernel: tpu_custom_call.1
$region0: #{tpu_custom_call.1}
  #allocation0 [shape = 'u32[]', space=smem, size = 0x4, offset = 0x4, fixed_abs, tag = 'smem constant byte address 0x4 - core index']
  #allocation1 [shape = 'u32[72,128]{1,0:T(1,128)}', space=vmem, size = 0x9000, scoped, tag = 'internal scratch']
  %s0 = inlined_call_operand.hbm [shape: f32[2,4,256], index: 0, kind: input, shape index: {}]
  %s1 = inlined_call_operand.vmem [shape: f32[4,36], index: 1, kind: input, shape index: {}]
  %s2 = inlined_call_operand.vmem [shape: f32[4,1], index: 2, kind: input, shape index: {}]
  %s3 = inlined_call_operand.vmem [shape: f32[4,36], index: 3, kind: input, shape index: {}]
  %s4 = inlined_call_operand.vmem [shape: f32[4,1], index: 4, kind: input, shape index: {}]
  %s5 = inlined_call_operand.hbm [shape: f32[2,4,256], index: 5, kind: output, shape index: {}]
  %s6 = sld [smem:[#allocation0]]
  $region57: #{tpu_custom_call.1} parent=0
    _
  %s8 = ssub.s32 1, %s6
  %s9 = scalar_select 0, %s8, %s6
  $region1: #{tpu_custom_call.1} parent=0
    #allocation2 [shape = 'u8[8192]{0}', space=vmem, size = 0x2000, scoped, tag = 'input window, operand 0']
    #allocation3 [shape = 's32[2]{0}', space=sflag, size = 0x8, scoped, tag = 'scoped memory for tpu_custom_call.1']
    #allocation4 [shape = 's32[2]{0}', space=sflag, size = 0x8, scoped, tag = 'scoped memory for tpu_custom_call.1']
    #allocation5 [shape = 'u8[8192]{0}', space=vmem, size = 0x2000, scoped, tag = 'output window, operand 0']
    %10 = vsyncpa [#allocation3], 0
    %s11 = scalar_lea.sflag [#allocation3], 1
    %12 = vsyncpa %s11, 0
    %13 = vsyncpa [#allocation4], 0
    %s14 = scalar_lea.sflag [#allocation4], 1
    %15 = vsyncpa %s14, 0
    loop: start=0, step=1, limit=4
    $region2: #{tpu_custom_call.1} parent=1 // loop_pre_header
      _
    $region3: #{tpu_custom_call.1} parent=1 // loop_header
      %s17 = sphi 0, %s21
      %p18 = scmp.ge.s32.totalorder %s17, 4
      %s27 = sphi 0, %s29
      %s30 = sphi 0, %s27
      %s31 = sphi 0, %s30
      %s47 = sphi 0, %s31
      %s51 = sphi 0, %s51
      %s53 = sphi 0, %s51
      %s54 = sphi 0, %s53
      %s68 = sphi 0, %s54
      %s72 = sphi 0, %s72
      %s74 = sphi 0, %s72
      %s75 = sphi 0, %s74
      %s89 = sphi 0, %s75
      %s93 = sphi 0, %s93
      %s95 = sphi 0, %s93
      %s96 = sphi 0, %s95
      %s110 = sphi 0, %s96
      %s114 = sphi 0, %s114
      %s116 = sphi 0, %s114
      %s117 = sphi 0, %s116
      %s131 = sphi 0, %s117
      %s137 = sphi 0, %s139
      %s140 = sphi 0, %s137
      %s141 = sphi 0, %s140
      %s157 = sphi 0, %s141
    $region4: #{tpu_custom_call.1} parent=1 // loop_header_branch
      %20 = sbr.rel (%p18) target = $region8
    $region5: #{tpu_custom_call.1} parent=1 // loop_body
      %s22 = ssub.s32 %s17, 1
      %s23 = ssub.s32 %s17, 2
      %s24 = sadd.s32 %s17, 1
      %s25 = ssub.s32 %s17, %s24
      %p26 = scmp.eq.s32.totalorder %s25, 0
      %s28 = sadd.s32 %s27, 1
      %s29 = scalar_select %p26, %s27, %s28
      %p32 = pneg %p26
      %p33 = scmp.eq.s32.totalorder %s17, 1
      %p34 = por %p32, %p33
      %p35 = scmp.ne.s32.totalorder %s27, %s30
      %p36 = scmp.eq.s32.totalorder %s17, 0
      %p37 = por %p35, %p36
      %p38 = scmp.ne.s32.totalorder %s27, %s30
      %p39 = scmp.eq.s32.totalorder %s22, 1
      %p40 = por %p38, %p39
      %p41 = scmp.ne.s32.totalorder %s30, %s31
      %p42 = scmp.eq.s32.totalorder %s22, 0
      %p43 = por %p41, %p42
      %p44 = scmp.ne.s32.totalorder %s30, %s31
      %p45 = scmp.eq.s32.totalorder %s23, 1
      %p46 = por %p44, %p45
      %p48 = scmp.ne.s32.totalorder %s31, %s47
      %p49 = scmp.eq.s32.totalorder %s23, 0
      %p50 = por %p48, %p49
      %s52 = sadd.s32 %s51, 1
      %p55 = scmp.eq.s32.totalorder %s17, 1
      %p56 = scmp.ne.s32.totalorder %s51, %s53
      %p57 = scmp.eq.s32.totalorder %s17, 0
      %p58 = por %p56, %p57
      %p59 = scmp.ne.s32.totalorder %s51, %s53
      %p60 = scmp.eq.s32.totalorder %s22, 1
      %p61 = por %p59, %p60
      %p62 = scmp.ne.s32.totalorder %s53, %s54
      %p63 = scmp.eq.s32.totalorder %s22, 0
      %p64 = por %p62, %p63
      %p65 = scmp.ne.s32.totalorder %s53, %s54
      %p66 = scmp.eq.s32.totalorder %s23, 1
      %p67 = por %p65, %p66
      %p69 = scmp.ne.s32.totalorder %s54, %s68
      %p70 = scmp.eq.s32.totalorder %s23, 0
      %p71 = por %p69, %p70
      %s73 = sadd.s32 %s72, 1
      %p76 = scmp.eq.s32.totalorder %s17, 1
      %p77 = scmp.ne.s32.totalorder %s72, %s74
      %p78 = scmp.eq.s32.totalorder %s17, 0
      %p79 = por %p77, %p78
      %p80 = scmp.ne.s32.totalorder %s72, %s74
      %p81 = scmp.eq.s32.totalorder %s22, 1
      %p82 = por %p80, %p81
      %p83 = scmp.ne.s32.totalorder %s74, %s75
      %p84 = scmp.eq.s32.totalorder %s22, 0
      %p85 = por %p83, %p84
      %p86 = scmp.ne.s32.totalorder %s74, %s75
      %p87 = scmp.eq.s32.totalorder %s23, 1
      %p88 = por %p86, %p87
      %p90 = scmp.ne.s32.totalorder %s75, %s89
      %p91 = scmp.eq.s32.totalorder %s23, 0
      %p92 = por %p90, %p91
      %s94 = sadd.s32 %s93, 1
      %p97 = scmp.eq.s32.totalorder %s17, 1
      %p98 = scmp.ne.s32.totalorder %s93, %s95
      %p99 = scmp.eq.s32.totalorder %s17, 0
      %p100 = por %p98, %p99
      %p101 = scmp.ne.s32.totalorder %s93, %s95
      %p102 = scmp.eq.s32.totalorder %s22, 1
      %p103 = por %p101, %p102
      %p104 = scmp.ne.s32.totalorder %s95, %s96
      %p105 = scmp.eq.s32.totalorder %s22, 0
      %p106 = por %p104, %p105
      %p107 = scmp.ne.s32.totalorder %s95, %s96
      %p108 = scmp.eq.s32.totalorder %s23, 1
      %p109 = por %p107, %p108
      %p111 = scmp.ne.s32.totalorder %s96, %s110
      %p112 = scmp.eq.s32.totalorder %s23, 0
      %p113 = por %p111, %p112
      %s115 = sadd.s32 %s114, 1
      %p118 = scmp.eq.s32.totalorder %s17, 1
      %p119 = scmp.ne.s32.totalorder %s114, %s116
      %p120 = scmp.eq.s32.totalorder %s17, 0
      %p121 = por %p119, %p120
      %p122 = scmp.ne.s32.totalorder %s114, %s116
      %p123 = scmp.eq.s32.totalorder %s22, 1
      %p124 = por %p122, %p123
      %p125 = scmp.ne.s32.totalorder %s116, %s117
      %p126 = scmp.eq.s32.totalorder %s22, 0
      %p127 = por %p125, %p126
      %p128 = scmp.ne.s32.totalorder %s116, %s117
      %p129 = scmp.eq.s32.totalorder %s23, 1
      %p130 = por %p128, %p129
      %p132 = scmp.ne.s32.totalorder %s117, %s131
      %p133 = scmp.eq.s32.totalorder %s23, 0
      %p134 = por %p132, %p133
      %s135 = ssub.s32 %s17, %s24
      %p136 = scmp.eq.s32.totalorder %s135, 0
      %s138 = sadd.s32 %s137, 1
      %s139 = scalar_select %p136, %s137, %s138
      %p142 = pneg %p136
      %p143 = scmp.eq.s32.totalorder %s17, 1
      %p144 = por %p142, %p143
      %p145 = scmp.ne.s32.totalorder %s137, %s140
      %p146 = scmp.eq.s32.totalorder %s17, 0
      %p147 = por %p145, %p146
      %p148 = scmp.ne.s32.totalorder %s137, %s140
      %p149 = scmp.eq.s32.totalorder %s22, 1
      %p150 = por %p148, %p149
      %p151 = scmp.ne.s32.totalorder %s140, %s141
      %p152 = scmp.eq.s32.totalorder %s22, 0
      %p153 = por %p151, %p152
      %p154 = scmp.ne.s32.totalorder %s140, %s141
      %p155 = scmp.eq.s32.totalorder %s23, 1
      %p156 = por %p154, %p155
      %p158 = scmp.ne.s32.totalorder %s141, %s157
      %p159 = scmp.eq.s32.totalorder %s23, 0
      %p160 = por %p158, %p159
      %p161 = scmp.le.s32.totalorder 1, %s17
      %p162 = scmp.lt.s32.totalorder %s17, 3
      %p163 = pnand %p161, %p162
      %p164 = pneg %p163
      // Predicated region
      $region9: #{tpu_custom_call.1} parent=5 // pred_check
        _
      $region10: #{tpu_custom_call.1} parent=5 // pred_check_branch
        %166 = sbr.rel (%p163) target = $region12
      $region11: #{tpu_custom_call.1} parent=5 // pred_region
        %s167 = ssub.s32 %s17, 1
        // Predicated region
        $region13: #{tpu_custom_call.1} parent=11 // pred_check
          %p168 = pneg %p64
        $region14: #{tpu_custom_call.1} parent=11 // pred_check_branch
          %170 = sbr.rel (%p168) target = $region16
        $region15: #{tpu_custom_call.1} parent=11 // pred_region
          _
        $region16: #{tpu_custom_call.1} parent=11 // pred_fallthru
          _
        // Predicated region
        $region17: #{tpu_custom_call.1} parent=11 // pred_check
          %p171 = pneg %p85
        $region18: #{tpu_custom_call.1} parent=11 // pred_check_branch
          %173 = sbr.rel (%p171) target = $region20
        $region19: #{tpu_custom_call.1} parent=11 // pred_region
          _
        $region20: #{tpu_custom_call.1} parent=11 // pred_fallthru
          _
        // Predicated region
        $region21: #{tpu_custom_call.1} parent=11 // pred_check
          %p174 = pneg %p106
        $region22: #{tpu_custom_call.1} parent=11 // pred_check_branch
          %176 = sbr.rel (%p174) target = $region24
        $region23: #{tpu_custom_call.1} parent=11 // pred_region
          _
        $region24: #{tpu_custom_call.1} parent=11 // pred_fallthru
          _
        // Predicated region
        $region25: #{tpu_custom_call.1} parent=11 // pred_check
          %p177 = pneg %p127
        $region26: #{tpu_custom_call.1} parent=11 // pred_check_branch
          %179 = sbr.rel (%p177) target = $region28
        $region27: #{tpu_custom_call.1} parent=11 // pred_region
          _
        $region28: #{tpu_custom_call.1} parent=11 // pred_fallthru
          _
      $region12: #{tpu_custom_call.1} parent=5 // pred_fallthru
        _
      %p180 = scmp.lt.s32.totalorder %s17, 2
      // Predicated region
      $region29: #{tpu_custom_call.1} parent=5 // pred_check
        %p181 = pneg %p180
      $region30: #{tpu_custom_call.1} parent=5 // pred_check_branch
        %183 = sbr.rel (%p181) target = $region32
      $region31: #{tpu_custom_call.1} parent=5 // pred_region
        // Predicated region
        $region33: #{tpu_custom_call.1} parent=31 // pred_check
          %p184 = pneg %p37
        $region34: #{tpu_custom_call.1} parent=31 // pred_check_branch
          %186 = sbr.rel (%p184) target = $region36
        $region35: #{tpu_custom_call.1} parent=31 // pred_region
          %s187 = sand.u32 %s27, 1
          %s188 = scalar_lea.sflag [#allocation3], %s187
          %s189 = sand.u32 %s27, 1
          %s190 = smul.addr %s189, 8
          %s191 = scalar_lea.vmem [#allocation2], %s190
          %193 = vsyncadd %s188, 0
          %s194 = smul.addr %s17, 2
          %s195 = smul.addr %s194, 4
          %s196 = scalar_lea.hbm %s0, %s195
          %s198 = sshll.u32 %s196, 4
          %s199 = int_to_ptr.hbm [resolvable:$true] %s198
          %s200 = sshll.u32 %s191, 4
          %s201 = int_to_ptr.vmem [resolvable:$true] %s200
          %203 = dma.hbm_to_vmem [thread:$0]  %s199, 128, %s201, %s188
        $region36: #{tpu_custom_call.1} parent=31 // pred_fallthru
          _
      $region32: #{tpu_custom_call.1} parent=5 // pred_fallthru
        _
      %p204 = scmp.le.s32.totalorder 1, %s17
      %p205 = scmp.lt.s32.totalorder %s17, 3
      %p206 = pnand %p204, %p205
      %p207 = pneg %p206
      // Predicated region
      $region37: #{tpu_custom_call.1} parent=5 // pred_check
        _
      $region38: #{tpu_custom_call.1} parent=5 // pred_check_branch
        %209 = sbr.rel (%p206) target = $region40
      $region39: #{tpu_custom_call.1} parent=5 // pred_region
        %s210 = ssub.s32 %s17, 1
        %s211 = sand.u32 %s30, 1
        %s212 = scalar_lea.sflag [#allocation3], %s211
        %s213 = sand.u32 %s30, 1
        %s214 = smul.addr %s213, 8
        %s215 = scalar_lea.vmem [#allocation2], %s214
        // Predicated region
        $region41: #{tpu_custom_call.1} parent=39 // pred_check
          %p216 = pneg %p43
        $region42: #{tpu_custom_call.1} parent=39 // pred_check_branch
          %218 = sbr.rel (%p216) target = $region44
        $region43: #{tpu_custom_call.1} parent=39 // pred_region
          %220 = dma.done %s212, 128
        $region44: #{tpu_custom_call.1} parent=39 // pred_fallthru
          _
        %s221 = sand.u32 %s30, 1
        %s222 = scalar_lea.sflag [#allocation3], %s221
        %s223 = sand.u32 %s30, 1
        %s224 = smul.addr %s223, 8
        %s225 = scalar_lea.vmem [#allocation2], %s224
        %p226 = pneg %p43
        %p227 = pneg %p40
        %p228 = pneg %p64
        %p229 = pneg %p61
        %p230 = pneg %p85
        %p231 = pneg %p82
        %p232 = pneg %p106
        %p233 = pneg %p103
        %p234 = pneg %p127
        %p235 = pneg %p124
        %p236 = pneg %p153
        %p237 = pneg %p150
        %s238 = sand.u32 %s140, 1
        %s239 = scalar_lea.sflag [#allocation4], %s238
        %s240 = sand.u32 %s140, 1
        %s241 = smul.addr %s240, 8
        %s242 = scalar_lea.vmem [#allocation5], %s241
        %v243 = vld [vmem:[%s1] sm:$0xf]
        %v244 = vld [vmem:[%s3] sm:$0xf]
        %v245 = vld [vmem:[%s2] sm:$0xf]
        %v246 = vld [vmem:[%s4] sm:$0xf]
        %v247 = vlaneseq
        %v248 = vand.u32 %v247, 127
        %v249 = vadd.s32 %v248, 128
        %v250 = vand.u32 %v248, 15
        %v251 = vand.u32 %v249, 15
        %vm252 = vcmp.eq.s32.totalorder %v250, 0
        %vm253 = vcmp.eq.s32.totalorder %v251, 0
        %vm254 = vcmp.eq.s32.totalorder %v250, 15
        %vm255 = vcmp.eq.s32.totalorder %v251, 15
        %vm256 = vcmp.lt.s32.totalorder %v248, 16
        %vm257 = vcmp.lt.s32.totalorder %v249, 16
        %vm258 = vcmp.ge.s32.totalorder %v248, 240
        %vm259 = vcmp.ge.s32.totalorder %v249, 240
        %v260 = vld [vmem:[%s215] sm:$0xff]
        %262 = vst [vmem:[#allocation1] ss:$2 sm:$0xff] %v260
        %v263 = vld.sshfl [vmem:[#allocation1 + $0x8] sm:$0xff pattern:$0x75316420]
        %264 = vrot.lane.b32.xlu0 %v263, 1
        %v265 = vpop.permute.xlu0 %264
        %267 = vst [vmem:[#allocation1] ss:$2 sm:$0xff] %v260
        %v268 = vld.sshfl [vmem:[#allocation1] sm:$0xff pattern:$0x75316420]
        %v269 = vld.sshfl [vmem:[#allocation1 + $0x8] sm:$0xff pattern:$0x75316420]
        %270 = vrot.lane.b32.xlu0 %v268, 1
        %v271 = vpop.permute.xlu0 %270
        %272 = vrot.lane.b32.xlu0 %v269, 1
        %v273 = vpop.permute.xlu0 %272
        %vm274 = vcmask 7168
        %v275 = vsel %vm274, %v271, %v273
        %v278 = vsel %vm274, %v265, %v271
        %279 = vst [vmem:[#allocation1] ss:$2 sm:$0xff] %v260
        %v280 = vld.sshfl [vmem:[#allocation1] sm:$0xff pattern:$0x75316420]
        %v281 = vld.sshfl [vmem:[#allocation1 + $0x8] sm:$0xff pattern:$0x75316420]
        %282 = vrot.lane.b32.xlu0 %v280, 127
        %v283 = vpop.permute.xlu0 %282
        %284 = vrot.lane.b32.xlu0 %v281, 127
        %v285 = vpop.permute.xlu0 %284
        %vm286 = vcmask 1039360
        %v287 = vsel %vm286, %v283, %v285
        %290 = vst [vmem:[#allocation1] ss:$2 sm:$0xff] %v260
        %v291 = vld.sshfl [vmem:[#allocation1] sm:$0xff pattern:$0x75316420]
        %292 = vrot.lane.b32.xlu0 %v291, 127
        %v293 = vpop.permute.xlu0 %292
        %v295 = vsel %vm286, %v285, %v293
        %v296 = vsel %vm252, %v287, %v278
        %v297 = vsel %vm253, %v295, %v275
        %v298 = vsel %vm254, %v278, %v287
        %v299 = vsel %vm255, %v275, %v295
        %301 = vrot.lane.b32.xlu0 %v297, 16
        %v302 = vpop.permute.xlu0 %301
        %305 = vrot.lane.b32.xlu0 %v296, 16
        %v306 = vpop.permute.xlu0 %305
        %vm307 = vcmask 130048
        %v308 = vsel %vm307, %v306, %v302
        %v311 = vsel %vm307, %v302, %v306
        %312 = vrot.lane.b32.xlu0 %v296, 112
        %v313 = vpop.permute.xlu0 %312
        %314 = vrot.lane.b32.xlu0 %v297, 112
        %v315 = vpop.permute.xlu0 %314
        %vm316 = vcmask 916480
        %v317 = vsel %vm316, %v313, %v315
        %v321 = vsel %vm316, %v315, %v313
        %v322 = vsel %vm256, %v317, %v311
        %v323 = vsel %vm257, %v321, %v308
        %v324 = vsel %vm258, %v311, %v317
        %v325 = vsel %vm259, %v308, %v321
        %326 = vst [vmem:[#allocation1] ss:$2 sm:$0xff] %v260
        %v327 = vld.sshfl [vmem:[#allocation1 + $0x8] sm:$0xff pattern:$0x75316420]
        %328 = vrot.lane.b32.xlu0 %v327, 16
        %v329 = vpop.permute.xlu0 %328
        %331 = vst [vmem:[#allocation1] ss:$2 sm:$0xff] %v260
        %v332 = vld.sshfl [vmem:[#allocation1] sm:$0xff pattern:$0x75316420]
        %v333 = vld.sshfl [vmem:[#allocation1 + $0x8] sm:$0xff pattern:$0x75316420]
        %334 = vrot.lane.b32.xlu0 %v332, 16
        %v335 = vpop.permute.xlu0 %334
        %336 = vrot.lane.b32.xlu0 %v333, 16
        %v337 = vpop.permute.xlu0 %336
        %v338 = vsel %vm307, %v335, %v337
        %v341 = vsel %vm307, %v329, %v335
        %342 = vst [vmem:[#allocation1] ss:$2 sm:$0xff] %v260
        %v343 = vld.sshfl [vmem:[#allocation1] sm:$0xff pattern:$0x75316420]
        %v344 = vld.sshfl [vmem:[#allocation1 + $0x8] sm:$0xff pattern:$0x75316420]
        %345 = vrot.lane.b32.xlu0 %v343, 112
        %v346 = vpop.permute.xlu0 %345
        %347 = vrot.lane.b32.xlu0 %v344, 112
        %v348 = vpop.permute.xlu0 %347
        %v349 = vsel %vm316, %v346, %v348
        %352 = vst [vmem:[#allocation1] ss:$2 sm:$0xff] %v260
        %v353 = vld.sshfl [vmem:[#allocation1] sm:$0xff pattern:$0x75316420]
        %354 = vrot.lane.b32.xlu0 %v353, 112
        %v355 = vpop.permute.xlu0 %354
        %v357 = vsel %vm316, %v348, %v355
        %v358 = vsel %vm256, %v349, %v341
        %v359 = vsel %vm257, %v357, %v338
        %v360 = vsel %vm258, %v341, %v349
        %v361 = vsel %vm259, %v338, %v357
        %363 = vrot.lane.b32.xlu0 %v299, 16
        %v364 = vpop.permute.xlu0 %363
        %367 = vrot.lane.b32.xlu0 %v298, 16
        %v368 = vpop.permute.xlu0 %367
        %v369 = vsel %vm307, %v368, %v364
        %v372 = vsel %vm307, %v364, %v368
        %373 = vrot.lane.b32.xlu0 %v298, 112
        %v374 = vpop.permute.xlu0 %373
        %375 = vrot.lane.b32.xlu0 %v299, 112
        %v376 = vpop.permute.xlu0 %375
        %v377 = vsel %vm316, %v374, %v376
        %v381 = vsel %vm316, %v376, %v374
        %v382 = vsel %vm256, %v377, %v372
        %v383 = vsel %vm257, %v381, %v369
        %v384 = vsel %vm258, %v372, %v377
        %v385 = vsel %vm259, %v369, %v381
        %v388 = vrot.slane %v358, 4
        %v389 = vrot.slane %v359, 4
        %v392 = vrot.slane %v296, 4
        %v393 = vrot.slane %v297, 4
        %396 = vst [vmem:[#allocation1] ss:$2 sm:$0xff] %v260
        %v397 = vld.sshfl [vmem:[#allocation1] sm:$0xff pattern:$0x75316420]
        %v398 = vld.sshfl [vmem:[#allocation1 + $0x8] sm:$0xff pattern:$0x75316420]
        %v401 = vrot.slane %v298, 4
        %v402 = vrot.slane %v299, 4
        %v407 = vrot.slane %v360, 4
        %v408 = vrot.slane %v361, 4
        %vm411 = vcmask 1043456
        %v412 = vsel %vm411, %v322, %v388
        %v413 = vsel %vm411, %v323, %v389
        %v414 = vsel %vm411, %v382, %v392
        %v415 = vsel %vm411, %v383, %v393
        %v416 = vsel %vm411, %v397, %v401
        %v417 = vsel %vm411, %v398, %v402
        %v418 = vsel %vm411, %v324, %v407
        %v419 = vsel %vm411, %v325, %v408
        %421 = vset.pattern.permute.xlu0 0
        %422 = vperm.xlu0 %421, %v245
        %v423 = vpop.permute.xlu0 %422
        %vm425 = vcmask 293888
        %v427 = vsel %vm425, %v243, 0
        %v430 = vsel %vm411, %v384, 0
        %v433 = vsel %vm411, %v385, 0
        %435 = vmatpush.msra.mxu0 0.0
        %436 = vmatpush.msra.mxu0 0.0
        %437 = vmatpush.msra.mxu0 0.0
        %438 = vmatpush.msra.mxu0 0.0
        %439 = vmatpush.msra.mxu0 0.0
        %440 = vmatpush.msra.mxu0 0.0
        %441 = vmatpush.msra.mxu0 0.0
        %442 = vmatpush.msra.mxu0 0.0
        %443 = vmatpush.msra.mxu0 0.0
        %444 = vmatpush.msra.mxu0 0.0
        %445 = vmatpush.msra.mxu0 0.0
        %446 = vmatpush.msra.mxu0 %v430
        %447 = vmatpush.msra.mxu0 %v418
        %448 = vmatpush.msra.mxu0 %v416
        %449 = vmatpush.msra.mxu0 %v414
        %450 = vmatpush.msra.mxu0 %v412
        %451 = vmatmul.f32.gmra.mxu0 %v427
        %v452 = vpop.f32.mrf.mxu0
        %v453 = vadd.f32 %v423, %v452
        %454 = vdwg.mxu0
        %455 = vmatpush.msra.mxu0 0.0
        %456 = vmatpush.msra.mxu0 0.0
        %457 = vmatpush.msra.mxu0 0.0
        %458 = vmatpush.msra.mxu0 0.0
        %459 = vmatpush.msra.mxu0 0.0
        %460 = vmatpush.msra.mxu0 0.0
        %461 = vmatpush.msra.mxu0 0.0
        %462 = vmatpush.msra.mxu0 0.0
        %463 = vmatpush.msra.mxu0 0.0
        %464 = vmatpush.msra.mxu0 0.0
        %465 = vmatpush.msra.mxu0 0.0
        %466 = vmatpush.msra.mxu0 %v433
        %467 = vmatpush.msra.mxu0 %v419
        %468 = vmatpush.msra.mxu0 %v417
        %469 = vmatpush.msra.mxu0 %v415
        %470 = vmatpush.msra.mxu0 %v413
        %471 = vmatmul.f32.gmra.mxu0 %v427
        %v472 = vpop.f32.mrf.mxu0
        %v473 = vadd.f32 %v423, %v472
        %474 = vdwg.mxu0
        %v475 = vsel %vm411, %v453, 0.0
        %v476 = vsel %vm411, %v473, 0.0
        %v477 = vadd.f32 %v475, %v476
        %478 = vadd.xlane.f32.xlu0 %v477
        %v479 = vpop.xlane.xlu0 %478
        %v480 = vmul.f32 %v453, %v453
        %v481 = vmul.f32 %v473, %v473
        %v482 = vsel %vm411, %v480, 0.0
        %v483 = vsel %vm411, %v481, 0.0
        %v484 = vadd.f32 %v482, %v483
        %485 = vadd.xlane.f32.xlu0 %v484
        %v486 = vpop.xlane.xlu0 %485
        %v487 = vmul.f32 %v479, 0.00390625
        %v488 = vmul.f32 %v486, 0.00390625
        %v489 = vmul.f32 %v487, %v487
        %v490 = vsub.f32 %v488, %v489
        %v491 = vmax.f32 %v490, 0.0
        %v492 = vsub.f32 %v453, %v487
        %v493 = vsub.f32 %v473, %v487
        %v494 = vadd.f32 %v491, 1e-05
        %v495 = vrsqrt.pop %v494
        %v496 = vmul.f32 %v495, %v494
        %v497 = vmul.f32 %v496, %v495
        %v498 = vmul.f32 0.5, %v497
        %v499 = vsub.f32 1.5, %v498
        %v500 = vmul.f32 %v495, %v499
        %vm501 = vweird.f32 %v494
        %vm502 = vweird.f32 %v495
        %vm503 = vmor %vm501, %vm502
        %v504 = vsel %vm503, %v495, %v500
        %v505 = vmul.f32 %v492, %v504
        %v506 = vmul.f32 %v493, %v504
        %v507 = vmax.f32 %v505, 0.0
        %v508 = vmax.f32 %v506, 0.0
        %510 = vrot.lane.b32.xlu0 %v508, 1
        %v511 = vpop.permute.xlu0 %510
        %514 = vrot.lane.b32.xlu0 %v507, 1
        %v515 = vpop.permute.xlu0 %514
        %v516 = vsel %vm274, %v515, %v511
        %v519 = vsel %vm274, %v511, %v515
        %520 = vrot.lane.b32.xlu0 %v507, 127
        %v521 = vpop.permute.xlu0 %520
        %522 = vrot.lane.b32.xlu0 %v508, 127
        %v523 = vpop.permute.xlu0 %522
        %v524 = vsel %vm286, %v521, %v523
        %v528 = vsel %vm286, %v523, %v521
        %v529 = vsel %vm252, %v524, %v519
        %v530 = vsel %vm253, %v528, %v516
        %v531 = vsel %vm254, %v519, %v524
        %v532 = vsel %vm255, %v516, %v528
        %534 = vrot.lane.b32.xlu0 %v530, 16
        %v535 = vpop.permute.xlu0 %534
        %538 = vrot.lane.b32.xlu0 %v529, 16
        %v539 = vpop.permute.xlu0 %538
        %v540 = vsel %vm307, %v539, %v535
        %v543 = vsel %vm307, %v535, %v539
        %544 = vrot.lane.b32.xlu0 %v529, 112
        %v545 = vpop.permute.xlu0 %544
        %546 = vrot.lane.b32.xlu0 %v530, 112
        %v547 = vpop.permute.xlu0 %546
        %v548 = vsel %vm316, %v545, %v547
        %v552 = vsel %vm316, %v547, %v545
        %v553 = vsel %vm256, %v548, %v543
        %v554 = vsel %vm257, %v552, %v540
        %v555 = vsel %vm258, %v543, %v548
        %v556 = vsel %vm259, %v540, %v552
        %557 = vrot.lane.b32.xlu0 %v508, 16
        %v558 = vpop.permute.xlu0 %557
        %560 = vrot.lane.b32.xlu0 %v507, 16
        %v561 = vpop.permute.xlu0 %560
        %v562 = vsel %vm307, %v561, %v558
        %v565 = vsel %vm307, %v558, %v561
        %566 = vrot.lane.b32.xlu0 %v507, 112
        %v567 = vpop.permute.xlu0 %566
        %568 = vrot.lane.b32.xlu0 %v508, 112
        %v569 = vpop.permute.xlu0 %568
        %v570 = vsel %vm316, %v567, %v569
        %v574 = vsel %vm316, %v569, %v567
        %v575 = vsel %vm256, %v570, %v565
        %v576 = vsel %vm257, %v574, %v562
        %v577 = vsel %vm258, %v565, %v570
        %v578 = vsel %vm259, %v562, %v574
        %580 = vrot.lane.b32.xlu0 %v532, 16
        %v581 = vpop.permute.xlu0 %580
        %584 = vrot.lane.b32.xlu0 %v531, 16
        %v585 = vpop.permute.xlu0 %584
        %v586 = vsel %vm307, %v585, %v581
        %v589 = vsel %vm307, %v581, %v585
        %590 = vrot.lane.b32.xlu0 %v531, 112
        %v591 = vpop.permute.xlu0 %590
        %592 = vrot.lane.b32.xlu0 %v532, 112
        %v593 = vpop.permute.xlu0 %592
        %v594 = vsel %vm316, %v591, %v593
        %v598 = vsel %vm316, %v593, %v591
        %v599 = vsel %vm256, %v594, %v589
        %v600 = vsel %vm257, %v598, %v586
        %v601 = vsel %vm258, %v589, %v594
        %v602 = vsel %vm259, %v586, %v598
        %v605 = vrot.slane %v575, 4
        %v606 = vrot.slane %v576, 4
        %v609 = vrot.slane %v529, 4
        %v610 = vrot.slane %v530, 4
        %v613 = vrot.slane %v531, 4
        %v614 = vrot.slane %v532, 4
        %v619 = vrot.slane %v577, 4
        %v620 = vrot.slane %v578, 4
        %v623 = vsel %vm411, %v553, %v605
        %v624 = vsel %vm411, %v554, %v606
        %v625 = vsel %vm411, %v599, %v609
        %v626 = vsel %vm411, %v600, %v610
        %v627 = vsel %vm411, %v507, %v613
        %v628 = vsel %vm411, %v508, %v614
        %v629 = vsel %vm411, %v555, %v619
        %v630 = vsel %vm411, %v556, %v620
        %632 = vset.pattern.permute.xlu0 0
        %633 = vperm.xlu0 %632, %v246
        %v634 = vpop.permute.xlu0 %633
        %v637 = vsel %vm425, %v244, 0
        %v640 = vsel %vm411, %v601, 0
        %v643 = vsel %vm411, %v602, 0
        %645 = vmatpush.msra.mxu0 0.0
        %646 = vmatpush.msra.mxu0 0.0
        %647 = vmatpush.msra.mxu0 0.0
        %648 = vmatpush.msra.mxu0 0.0
        %649 = vmatpush.msra.mxu0 0.0
        %650 = vmatpush.msra.mxu0 0.0
        %651 = vmatpush.msra.mxu0 0.0
        %652 = vmatpush.msra.mxu0 0.0
        %653 = vmatpush.msra.mxu0 0.0
        %654 = vmatpush.msra.mxu0 0.0
        %655 = vmatpush.msra.mxu0 0.0
        %656 = vmatpush.msra.mxu0 %v640
        %657 = vmatpush.msra.mxu0 %v629
        %658 = vmatpush.msra.mxu0 %v627
        %659 = vmatpush.msra.mxu0 %v625
        %660 = vmatpush.msra.mxu0 %v623
        %661 = vmatmul.f32.gmra.mxu0 %v637
        %v662 = vpop.f32.mrf.mxu0
        %v663 = vadd.f32 %v634, %v662
        %664 = vdwg.mxu0
        %665 = vmatpush.msra.mxu0 0.0
        %666 = vmatpush.msra.mxu0 0.0
        %667 = vmatpush.msra.mxu0 0.0
        %668 = vmatpush.msra.mxu0 0.0
        %669 = vmatpush.msra.mxu0 0.0
        %670 = vmatpush.msra.mxu0 0.0
        %671 = vmatpush.msra.mxu0 0.0
        %672 = vmatpush.msra.mxu0 0.0
        %673 = vmatpush.msra.mxu0 0.0
        %674 = vmatpush.msra.mxu0 0.0
        %675 = vmatpush.msra.mxu0 0.0
        %676 = vmatpush.msra.mxu0 %v643
        %677 = vmatpush.msra.mxu0 %v630
        %678 = vmatpush.msra.mxu0 %v628
        %679 = vmatpush.msra.mxu0 %v626
        %680 = vmatpush.msra.mxu0 %v624
        %681 = vmatmul.f32.gmra.mxu0 %v637
        %v682 = vpop.f32.mrf.mxu0
        %v683 = vadd.f32 %v634, %v682
        %684 = vdwg.mxu0
        %v685 = vsel %vm411, %v663, 0.0
        %v686 = vsel %vm411, %v683, 0.0
        %v687 = vadd.f32 %v685, %v686
        %688 = vadd.xlane.f32.xlu0 %v687
        %v689 = vpop.xlane.xlu0 %688
        %v690 = vmul.f32 %v663, %v663
        %v691 = vmul.f32 %v683, %v683
        %v692 = vsel %vm411, %v690, 0.0
        %v693 = vsel %vm411, %v691, 0.0
        %v694 = vadd.f32 %v692, %v693
        %695 = vadd.xlane.f32.xlu0 %v694
        %v696 = vpop.xlane.xlu0 %695
        %v697 = vmul.f32 %v689, 0.00390625
        %v698 = vmul.f32 %v696, 0.00390625
        %v699 = vmul.f32 %v697, %v697
        %v700 = vsub.f32 %v698, %v699
        %v701 = vmax.f32 %v700, 0.0
        %v702 = vsub.f32 %v663, %v697
        %v703 = vsub.f32 %v683, %v697
        %v704 = vadd.f32 %v701, 1e-05
        %v705 = vrsqrt.pop %v704
        %v706 = vmul.f32 %v705, %v704
        %v707 = vmul.f32 %v706, %v705
        %v708 = vmul.f32 0.5, %v707
        %v709 = vsub.f32 1.5, %v708
        %v710 = vmul.f32 %v705, %v709
        %vm711 = vweird.f32 %v704
        %vm712 = vweird.f32 %v705
        %vm713 = vmor %vm711, %vm712
        %v714 = vsel %vm713, %v705, %v710
        %v715 = vmul.f32 %v702, %v714
        %v716 = vmul.f32 %v703, %v714
        %v719 = vrot.slane %v716, 4
        %v720 = vsel %vm411, %v715, %v719
        %v722 = vadd.f32 %v260, %v720
        %723 = vst [vmem:[%s242] sm:$0xff] %v722
        %s724 = sand.u32 %s140, 1
        %s725 = scalar_lea.sflag [#allocation4], %s724
        %s726 = sand.u32 %s140, 1
        %s727 = smul.addr %s726, 8
        %s728 = scalar_lea.vmem [#allocation5], %s727
        // Predicated region
        $region45: #{tpu_custom_call.1} parent=39 // pred_check
          %p729 = pneg %p150
        $region46: #{tpu_custom_call.1} parent=39 // pred_check_branch
          %731 = sbr.rel (%p729) target = $region48
        $region47: #{tpu_custom_call.1} parent=39 // pred_region
          %733 = vsyncadd %s725, 0
          %s734 = smul.addr %s22, 2
          %s735 = smul.addr %s734, 4
          %s736 = scalar_lea.hbm %s5, %s735
          %s738 = sshll.u32 %s728, 4
          %s739 = int_to_ptr.vmem [resolvable:$true] %s738
          %s740 = sshll.u32 %s736, 4
          %s741 = int_to_ptr.hbm [resolvable:$true] %s740
          %743 = dma.vmem_to_hbm [thread:$0]  %s739, 128, %s741, %s725
        $region48: #{tpu_custom_call.1} parent=39 // pred_fallthru
          _
      $region40: #{tpu_custom_call.1} parent=5 // pred_fallthru
        _
      %p744 = scmp.le.s32.totalorder 2, %s17
      // Predicated region
      $region49: #{tpu_custom_call.1} parent=5 // pred_check
        %p745 = pneg %p744
      $region50: #{tpu_custom_call.1} parent=5 // pred_check_branch
        %747 = sbr.rel (%p745) target = $region52
      $region51: #{tpu_custom_call.1} parent=5 // pred_region
        %s748 = ssub.s32 %s17, 2
        // Predicated region
        $region53: #{tpu_custom_call.1} parent=51 // pred_check
          %p749 = pneg %p156
        $region54: #{tpu_custom_call.1} parent=51 // pred_check_branch
          %751 = sbr.rel (%p749) target = $region56
        $region55: #{tpu_custom_call.1} parent=51 // pred_region
          %s752 = sand.u32 %s141, 1
          %s753 = scalar_lea.sflag [#allocation4], %s752
          %s754 = sand.u32 %s141, 1
          %s755 = smul.addr %s754, 8
          %s756 = scalar_lea.vmem [#allocation5], %s755
          %758 = dma.done %s753, 128
        $region56: #{tpu_custom_call.1} parent=51 // pred_fallthru
          _
      $region52: #{tpu_custom_call.1} parent=5 // pred_fallthru
        _
    $region6: #{tpu_custom_call.1} parent=1 // loop_footer
      %s21 = sadd.s32 1, %s17
    $region7: #{tpu_custom_call.1} parent=1 // loop_footer_branch
      %16 = sbr.rel target = $region3
    $region8: #{tpu_custom_call.1} parent=1 // loop_exit
      _
    %759 = vsyncpa [#allocation3], 1
    %s760 = scalar_lea.sflag [#allocation3], 1
    %761 = vsyncpa %s760, 1
    %762 = vsyncpa [#allocation4], 1
    %s763 = scalar_lea.sflag [#allocation4], 1
    %764 = vsyncpa %s763, 1

</llo_original>
